<compile_context>
chip_gen: v7x
topology: tpu7x:2x2x1
jax: 0.10.0
libtpu: 0.0.40
codegen_flags: <defaults>
</compile_context>

<pallas_src>
import numpy as np
import jax
import jax.numpy as jnp
from jax import lax
from jax.experimental import pallas as pl
from jax.experimental.pallas import tpu as pltpu

KSIZE = 5
PAD = 2  # == padding=2 in F.conv2d


def gauss_kernel_1d(size=5, sigma=2.0):
    """Reproduces cv2.getGaussianKernel(size, sigma) for sigma > 0."""
    i = np.arange(size, dtype=np.float64)
    center = (size - 1) * 0.5
    g = np.exp(-0.5 * ((i - center) / sigma) ** 2)
    return g / g.sum()


def make_gaussian_weight(channels=3, size=5, sigma=2.0):
    """Depthwise (C, 5, 5) weight, identical per channel (for the reference)."""
    g = gauss_kernel_1d(size, sigma)
    k2d = np.outer(g, g)                                  # (5, 5), sums to 1
    w = np.broadcast_to(k2d, (channels, size, size))
    return jnp.asarray(w, dtype=jnp.float32)


def band_toeplitz(n, taps):
    """Banded Toeplitz matrix M with M[i, i + d] = taps[d + pad] for |d| <= pad.

    Applying M from the left realizes a 1-D correlation with `taps` and
    zero padding of width `pad` (out-of-range rows are simply absent).
    """
    k = len(taps)
    pad = (k - 1) // 2
    m = np.zeros((n, n), dtype=np.float64)
    for a in range(k):
        off = a - pad
        idx = np.arange(max(0, -off), min(n, n - off))
        m[idx, idx + off] = taps[a]
    return m


def _gaussian_toeplitz_kernel(v_ref, x_ref, hb_ref, o_ref):
    # v_ref : VMEM (H, H)  vertical band matrix   (grid-resident constant)
    # x_ref : VMEM (H, W)  one (n, c) channel slab (N, C squeezed away)
    # hb_ref: VMEM (W, W)  horizontal band matrix (grid-resident constant)
    # o_ref : VMEM (H, W)  output slab
    x = x_ref[...].astype(jnp.float32)
    # Vertical 5-tap pass + zero padding, as one MXU matmul.
    tmp = jnp.dot(v_ref[...], x, preferred_element_type=jnp.float32)       # (H, W)
    # Horizontal 5-tap pass + zero padding, as a second MXU matmul.
    out = jnp.dot(tmp, hb_ref[...], preferred_element_type=jnp.float32)    # (H, W)
    o_ref[...] = out.astype(o_ref.dtype)


def gaussian_conv(x, sigma=2.0):
    """Depthwise 5x5 Gaussian conv, padding=2, groups=C.  x: (N, C, H, W)."""
    N, C, H, W = x.shape
    g = gauss_kernel_1d(KSIZE, sigma)
    # out[c] = V @ x[c] @ Hb   reproduces conv2d(outer(g, g), padding=2).
    V = jnp.asarray(band_toeplitz(H, g), dtype=jnp.float32)        # (H, H)
    Hb = jnp.asarray(band_toeplitz(W, g).T, dtype=jnp.float32)     # (W, W)

    return pl.pallas_call(
        _gaussian_toeplitz_kernel,
        out_shape=jax.ShapeDtypeStruct((N, C, H, W), x.dtype),
        grid=(N, C),
        in_specs=[
            # Band matrices: constant block index -> stay VMEM-resident.
            pl.BlockSpec((H, H), lambda n, c: (0, 0)),
            # One channel slab per grid step; N and C dims squeezed away.
            pl.BlockSpec((None, None, H, W), lambda n, c: (n, c, 0, 0)),
            pl.BlockSpec((W, W), lambda n, c: (0, 0)),
        ],
        out_specs=pl.BlockSpec((None, None, H, W), lambda n, c: (n, c, 0, 0)),
        compiler_params=pltpu.CompilerParams(
            dimension_semantics=("parallel", "parallel"),
            vmem_limit_bytes=32 * 1024 * 1024,
        ),
    )(V, x, Hb)


def gaussian_conv_reference(x, weight):
    """Pure-JAX reference: F.conv2d(x, w, padding=2, groups=C)."""
    C = x.shape[1]
    w = weight[:, None, :, :]  # (C, 1, 5, 5) == OIHW with I=1 (grouped)
    return lax.conv_general_dilated(
        x, w,
        window_strides=(1, 1),
        padding=[(PAD, PAD), (PAD, PAD)],
        dimension_numbers=("NCHW", "OIHW", "NCHW"),
        feature_group_count=C,
    )


if __name__ == "__main__":
    N, C, H, W = 2, 3, 16, 16
    key = jax.random.PRNGKey(0)
    x = jax.random.normal(key, (N, C, H, W), dtype=jnp.float32)

    out = jax.block_until_ready(gaussian_conv(x, sigma=2.0))

    weight = make_gaussian_weight(channels=C, size=KSIZE, sigma=2.0)
    ref = jax.block_until_ready(gaussian_conv_reference(x, weight))
    np.testing.assert_allclose(np.asarray(out), np.asarray(ref),
                               rtol=1e-5, atol=1e-5)
    print("KERNEL_OK")
</pallas_src>

<mosaic_0001>
module attributes {stable_mosaic.version = 11 : i64} {
  func.func @_gaussian_toeplitz_kernel(%arg0: i32, %arg1: i32, %arg2: memref<16x16xf32, #tpu.memory_space<vmem>>, %arg3: memref<1x1x16x16xf32, #tpu.memory_space<vmem>>, %arg4: memref<16x16xf32, #tpu.memory_space<vmem>>, %arg5: memref<1x1x16x16xf32, #tpu.memory_space<vmem>>) attributes {dimension_semantics = [#tpu.dimension_semantics<parallel>, #tpu.dimension_semantics<parallel>], iteration_bounds = array<i64: 2, 3>, scalar_prefetch = 0 : i64, scratch_operands = 0 : i64, tpu.core_type = #tpu.core_type<tc>, window_params = [{pipeline_mode = #tpu.pipeline_mode<synchronous>, transform_indices = @transform_0, window_bounds = array<i64: 16, 16>}, {transform_indices = @transform_1, window_bounds = array<i64: 1, 1, 16, 16>}, {pipeline_mode = #tpu.pipeline_mode<synchronous>, transform_indices = @transform_2, window_bounds = array<i64: 16, 16>}, {transform_indices = @transform_3, window_bounds = array<i64: 1, 1, 16, 16>}]} {
    %c0 = arith.constant 0 : index
    %c0_0 = arith.constant 0 : index
    %c0_1 = arith.constant 0 : index
    %c0_2 = arith.constant 0 : index
    %0 = vector.load %arg3[%c0, %c0_0, %c0_1, %c0_2] : memref<1x1x16x16xf32, #tpu.memory_space<vmem>>, vector<1x1x16x16xf32>
    %1 = vector.shape_cast %0 : vector<1x1x16x16xf32> to vector<16x16xf32>
    %c0_3 = arith.constant 0 : index
    %c0_4 = arith.constant 0 : index
    %2 = vector.load %arg2[%c0_3, %c0_4] : memref<16x16xf32, #tpu.memory_space<vmem>>, vector<16x16xf32>
    %cst = arith.constant dense<0.000000e+00> : vector<16x16xf32>
    %3 = tpu.matmul %2, %1, %cst {dimension_numbers = #tpu.dot_dimension_numbers<[1], [0], [0], [1], [0, 0, 1, 1], [], []>} : vector<16x16xf32>, vector<16x16xf32>, vector<16x16xf32> -> vector<16x16xf32>
    %c0_5 = arith.constant 0 : index
    %c0_6 = arith.constant 0 : index
    %4 = vector.load %arg4[%c0_5, %c0_6] : memref<16x16xf32, #tpu.memory_space<vmem>>, vector<16x16xf32>
    %cst_7 = arith.constant dense<0.000000e+00> : vector<16x16xf32>
    %5 = tpu.matmul %3, %4, %cst_7 {dimension_numbers = #tpu.dot_dimension_numbers<[1], [0], [0], [1], [0, 0, 1, 1], [], []>} : vector<16x16xf32>, vector<16x16xf32>, vector<16x16xf32> -> vector<16x16xf32>
    %c0_8 = arith.constant 0 : index
    %c0_9 = arith.constant 0 : index
    %c0_10 = arith.constant 0 : index
    %c0_11 = arith.constant 0 : index
    %6 = vector.load %arg5[%c0_8, %c0_9, %c0_10, %c0_11] : memref<1x1x16x16xf32, #tpu.memory_space<vmem>>, vector<1x1x16x16xf32>
    %7 = vector.shape_cast %6 : vector<1x1x16x16xf32> to vector<16x16xf32>
    %8 = vector.shape_cast %5 : vector<16x16xf32> to vector<1x1x16x16xf32>
    tpu.vector_store %arg5[%c0_8, %c0_9, %c0_10, %c0_11], %8 {strides = array<i32>} : memref<1x1x16x16xf32, #tpu.memory_space<vmem>>, vector<1x1x16x16xf32>,
    return
  }
  func.func @transform_0(%arg0: i32, %arg1: i32) -> (i32, i32) {
    %c0_i32 = arith.constant 0 : i32
    %c0_i32_0 = arith.constant 0 : i32
    %c0_i32_1 = arith.constant 0 : i32
    return %c0_i32, %c0_i32_0 : i32, i32
  }
  func.func @transform_1(%arg0: i32, %arg1: i32) -> (i32, i32, i32, i32) {
    %c0_i32 = arith.constant 0 : i32
    %c0_i32_0 = arith.constant 0 : i32
    %c0_i32_1 = arith.constant 0 : i32
    return %arg0, %arg1, %c0_i32, %c0_i32_0 : i32, i32, i32, i32
  }
  func.func @transform_2(%arg0: i32, %arg1: i32) -> (i32, i32) {
    %c0_i32 = arith.constant 0 : i32
    %c0_i32_0 = arith.constant 0 : i32
    %c0_i32_1 = arith.constant 0 : i32
    return %c0_i32, %c0_i32_0 : i32, i32
  }
  func.func @transform_3(%arg0: i32, %arg1: i32) -> (i32, i32, i32, i32) {
    %c0_i32 = arith.constant 0 : i32
    %c0_i32_0 = arith.constant 0 : i32
    %c0_i32_1 = arith.constant 0 : i32
    return %arg0, %arg1, %c0_i32, %c0_i32_0 : i32, i32, i32, i32
  }
}

</mosaic_0001>

<llo_original>
// kernel: tpu_custom_call.1
$region0: #{tpu_custom_call.1}
  #allocation0 [shape = 'u32[]', space=smem, size = 0x4, offset = 0x4, fixed_abs, tag = 'smem constant byte address 0x4 - core index']
  #allocation1 [shape = 'u32[144,128]{1,0:T(1,128)}', space=vmem, size = 0x12000, scoped, tag = 'internal scratch']
  %s0 = inlined_call_operand.hbm [shape: f32[16,16], index: 0, kind: input, shape index: {}]
  %s1 = inlined_call_operand.hbm [shape: f32[2,3,16,16], index: 1, kind: input, shape index: {}]
  %s2 = inlined_call_operand.hbm [shape: f32[16,16], index: 2, kind: input, shape index: {}]
  %s3 = inlined_call_operand.hbm [shape: f32[2,3,16,16], index: 3, kind: output, shape index: {}]
  %s4 = sld [smem:[#allocation0]]
  $region57: #{tpu_custom_call.1} parent=0
    _
  %s6 = ssub.s32 1, %s4
  %s7 = scalar_select 0, %s6, %s4
  $region1: #{tpu_custom_call.1} parent=0
    #allocation2 [shape = 'u8[8192]{0}', space=vmem, size = 0x2000, scoped, tag = 'input window, operand 0, single buffered']
    #allocation3 [shape = 's32[2]{0}', space=sflag, size = 0x8, scoped, tag = 'scoped memory for tpu_custom_call.1']
    #allocation4 [shape = 's32[2]{0}', space=sflag, size = 0x8, scoped, tag = 'scoped memory for tpu_custom_call.1']
    #allocation5 [shape = 'u8[16384]{0}', space=vmem, size = 0x4000, scoped, tag = 'input window, operand 1']
    #allocation6 [shape = 's32[2]{0}', space=sflag, size = 0x8, scoped, tag = 'scoped memory for tpu_custom_call.1']
    #allocation7 [shape = 'u8[8192]{0}', space=vmem, size = 0x2000, scoped, tag = 'input window, operand 2, single buffered']
    #allocation8 [shape = 'u8[16384]{0}', space=vmem, size = 0x4000, scoped, tag = 'output window, operand 0']
    %8 = vsyncpa [#allocation3], 0
    %9 = vsyncpa [#allocation6], 0
    %s10 = scalar_lea.sflag [#allocation6], 1
    %11 = vsyncpa %s10, 0
    %12 = vsyncpa [#allocation4], 0
    %s13 = scalar_lea.sflag [#allocation4], 1
    %14 = vsyncpa %s13, 0
    loop: start=0, step=1, limit=8
    $region2: #{tpu_custom_call.1} parent=1 // loop_pre_header
      _
    $region3: #{tpu_custom_call.1} parent=1 // loop_header
      %s16 = sphi 0, %s20
      %p17 = scmp.ge.s32.totalorder %s16, 8
      %s23 = sphi 0, %s35
      %s24 = sphi 0, %s31
      %s25 = sphi 0, %s23
      %s26 = sphi 0, %s24
      %s27 = sphi 0, %s25
      %s28 = sphi 0, %s26
      %s36 = sphi 0, %s36
      %s38 = sphi 0, %s36
      %s39 = sphi 0, %s38
      %s53 = sphi 0, %s39
      %s61 = sphi 0, %s63
      %s64 = sphi 0, %s61
      %s65 = sphi 0, %s64
      %s81 = sphi 0, %s65
      %s85 = sphi 0, %s85
      %s87 = sphi 0, %s85
      %s88 = sphi 0, %s87
      %s102 = sphi 0, %s88
      %s110 = sphi 0, %s112
      %s113 = sphi 0, %s110
      %s114 = sphi 0, %s113
      %s130 = sphi 0, %s114
    $region4: #{tpu_custom_call.1} parent=1 // loop_header_branch
      %19 = sbr.rel (%p17) target = $region8
    $region5: #{tpu_custom_call.1} parent=1 // loop_body
      %s21 = ssub.s32 %s16, 1
      %s22 = ssub.s32 %s16, 2
      %s29 = sadd.s32 1, %s24
      %p30 = scmp.ge.s32.totalorder %s29, 3
      %s31 = scalar_select %p30, 0, %s29
      %s32 = sadd.s32 1, %s23
      %s33 = scalar_select %p30, %s32, %s23
      %p34 = scmp.ge.s32.totalorder %s33, 2
      %s35 = scalar_select %p34, 0, %s33
      %s37 = sadd.s32 %s36, 1
      %p40 = scmp.eq.s32.totalorder %s16, 5
      %p41 = scmp.ne.s32.totalorder %s36, %s38
      %p42 = scmp.eq.s32.totalorder %s16, 0
      %p43 = por %p41, %p42
      %p44 = scmp.ne.s32.totalorder %s36, %s38
      %p45 = scmp.eq.s32.totalorder %s21, 5
      %p46 = por %p44, %p45
      %p47 = scmp.ne.s32.totalorder %s38, %s39
      %p48 = scmp.eq.s32.totalorder %s21, 0
      %p49 = por %p47, %p48
      %p50 = scmp.ne.s32.totalorder %s38, %s39
      %p51 = scmp.eq.s32.totalorder %s22, 5
      %p52 = por %p50, %p51
      %p54 = scmp.ne.s32.totalorder %s39, %s53
      %p55 = scmp.eq.s32.totalorder %s22, 0
      %p56 = por %p54, %p55
      %s57 = ssub.s32 %s23, %s35
      %s58 = ssub.s32 %s24, %s31
      %s59 = sor.u32 %s57, %s58
      %p60 = scmp.eq.s32.totalorder %s59, 0
      %s62 = sadd.s32 %s61, 1
      %s63 = scalar_select %p60, %s61, %s62
      %p66 = pneg %p60
      %p67 = scmp.eq.s32.totalorder %s16, 5
      %p68 = por %p66, %p67
      %p69 = scmp.ne.s32.totalorder %s61, %s64
      %p70 = scmp.eq.s32.totalorder %s16, 0
      %p71 = por %p69, %p70
      %p72 = scmp.ne.s32.totalorder %s61, %s64
      %p73 = scmp.eq.s32.totalorder %s21, 5
      %p74 = por %p72, %p73
      %p75 = scmp.ne.s32.totalorder %s64, %s65
      %p76 = scmp.eq.s32.totalorder %s21, 0
      %p77 = por %p75, %p76
      %p78 = scmp.ne.s32.totalorder %s64, %s65
      %p79 = scmp.eq.s32.totalorder %s22, 5
      %p80 = por %p78, %p79
      %p82 = scmp.ne.s32.totalorder %s65, %s81
      %p83 = scmp.eq.s32.totalorder %s22, 0
      %p84 = por %p82, %p83
      %s86 = sadd.s32 %s85, 1
      %p89 = scmp.eq.s32.totalorder %s16, 5
      %p90 = scmp.ne.s32.totalorder %s85, %s87
      %p91 = scmp.eq.s32.totalorder %s16, 0
      %p92 = por %p90, %p91
      %p93 = scmp.ne.s32.totalorder %s85, %s87
      %p94 = scmp.eq.s32.totalorder %s21, 5
      %p95 = por %p93, %p94
      %p96 = scmp.ne.s32.totalorder %s87, %s88
      %p97 = scmp.eq.s32.totalorder %s21, 0
      %p98 = por %p96, %p97
      %p99 = scmp.ne.s32.totalorder %s87, %s88
      %p100 = scmp.eq.s32.totalorder %s22, 5
      %p101 = por %p99, %p100
      %p103 = scmp.ne.s32.totalorder %s88, %s102
      %p104 = scmp.eq.s32.totalorder %s22, 0
      %p105 = por %p103, %p104
      %s106 = ssub.s32 %s23, %s35
      %s107 = ssub.s32 %s24, %s31
      %s108 = sor.u32 %s106, %s107
      %p109 = scmp.eq.s32.totalorder %s108, 0
      %s111 = sadd.s32 %s110, 1
      %s112 = scalar_select %p109, %s110, %s111
      %p115 = pneg %p109
      %p116 = scmp.eq.s32.totalorder %s16, 5
      %p117 = por %p115, %p116
      %p118 = scmp.ne.s32.totalorder %s110, %s113
      %p119 = scmp.eq.s32.totalorder %s16, 0
      %p120 = por %p118, %p119
      %p121 = scmp.ne.s32.totalorder %s110, %s113
      %p122 = scmp.eq.s32.totalorder %s21, 5
      %p123 = por %p121, %p122
      %p124 = scmp.ne.s32.totalorder %s113, %s114
      %p125 = scmp.eq.s32.totalorder %s21, 0
      %p126 = por %p124, %p125
      %p127 = scmp.ne.s32.totalorder %s113, %s114
      %p128 = scmp.eq.s32.totalorder %s22, 5
      %p129 = por %p127, %p128
      %p131 = scmp.ne.s32.totalorder %s114, %s130
      %p132 = scmp.eq.s32.totalorder %s22, 0
      %p133 = por %p131, %p132
      %p134 = scmp.le.s32.totalorder 1, %s16
      %p135 = scmp.lt.s32.totalorder %s16, 7
      %p136 = pnand %p134, %p135
      %p137 = pneg %p136
      // Predicated region
      $region9: #{tpu_custom_call.1} parent=5 // pred_check
        _
      $region10: #{tpu_custom_call.1} parent=5 // pred_check_branch
        %139 = sbr.rel (%p136) target = $region12
      $region11: #{tpu_custom_call.1} parent=5 // pred_region
        %s140 = ssub.s32 %s16, 1
        // Predicated region
        $region13: #{tpu_custom_call.1} parent=11 // pred_check
          %p141 = pneg %p49
        $region14: #{tpu_custom_call.1} parent=11 // pred_check_branch
          %143 = sbr.rel (%p141) target = $region16
        $region15: #{tpu_custom_call.1} parent=11 // pred_region
          %s145 = ssub.s32 256, 256
          %146 = vsyncadd [#allocation3], %s145
          %s147 = sshll.u32 [#allocation2], 4
          %s148 = int_to_ptr.vmem [resolvable:$true] %s147
          %153 = dma.hbm_to_vmem [thread:$0]  %s0, 256, %s148, [#allocation3], 128, 128, 8
        $region16: #{tpu_custom_call.1} parent=11 // pred_fallthru
          _
        // Predicated region
        $region17: #{tpu_custom_call.1} parent=11 // pred_check
          %p154 = pneg %p98
        $region18: #{tpu_custom_call.1} parent=11 // pred_check_branch
          %156 = sbr.rel (%p154) target = $region20
        $region19: #{tpu_custom_call.1} parent=11 // pred_region
          %s158 = ssub.s32 256, 256
          %159 = vsyncadd [#allocation6], %s158
          %s160 = sshll.u32 [#allocation7], 4
          %s161 = int_to_ptr.vmem [resolvable:$true] %s160
          %166 = dma.hbm_to_vmem [thread:$0]  %s2, 256, %s161, [#allocation6], 128, 128, 8
        $region20: #{tpu_custom_call.1} parent=11 // pred_fallthru
          _
      $region12: #{tpu_custom_call.1} parent=5 // pred_fallthru
        _
      %p167 = scmp.lt.s32.totalorder %s16, 6
      // Predicated region
      $region21: #{tpu_custom_call.1} parent=5 // pred_check
        %p168 = pneg %p167
      $region22: #{tpu_custom_call.1} parent=5 // pred_check_branch
        %170 = sbr.rel (%p168) target = $region24
      $region23: #{tpu_custom_call.1} parent=5 // pred_region
        // Predicated region
        $region25: #{tpu_custom_call.1} parent=23 // pred_check
          %p171 = pneg %p71
        $region26: #{tpu_custom_call.1} parent=23 // pred_check_branch
          %173 = sbr.rel (%p171) target = $region28
        $region27: #{tpu_custom_call.1} parent=23 // pred_region
          %s174 = sand.u32 %s16, 1
          %s175 = scalar_lea.sflag [#allocation6], %s174
          %s176 = sand.u32 %s61, 1
          %s177 = smul.addr %s176, 16
          %s178 = scalar_lea.vmem [#allocation5], %s177
          %s180 = ssub.s32 256, 256
          %181 = vsyncadd %s175, %s180
          %s182 = smul.addr %s24, 2
          %s183 = smul.addr %s23, 6
          %s184 = sadd.s32 %s182, %s183
          %s185 = smul.addr %s184, 128
          %s186 = scalar_lea.hbm %s1, %s185
          %s187 = sshll.u32 %s178, 4
          %s188 = int_to_ptr.vmem [resolvable:$true] %s187
          %193 = dma.hbm_to_vmem [thread:$0]  %s186, 256, %s188, %s175, 128, 128, 8
        $region28: #{tpu_custom_call.1} parent=23 // pred_fallthru
          _
      $region24: #{tpu_custom_call.1} parent=5 // pred_fallthru
        _
      %p194 = scmp.le.s32.totalorder 1, %s16
      %p195 = scmp.lt.s32.totalorder %s16, 7
      %p196 = pnand %p194, %p195
      %p197 = pneg %p196
      // Predicated region
      $region29: #{tpu_custom_call.1} parent=5 // pred_check
        _
      $region30: #{tpu_custom_call.1} parent=5 // pred_check_branch
        %199 = sbr.rel (%p196) target = $region32
      $region31: #{tpu_custom_call.1} parent=5 // pred_region
        %s200 = ssub.s32 %s16, 1
        // Predicated region
        $region33: #{tpu_custom_call.1} parent=31 // pred_check
          %p201 = pneg %p49
        $region34: #{tpu_custom_call.1} parent=31 // pred_check_branch
          %203 = sbr.rel (%p201) target = $region36
        $region35: #{tpu_custom_call.1} parent=31 // pred_region
          %204 = dma.done [#allocation3], 256
        $region36: #{tpu_custom_call.1} parent=31 // pred_fallthru
          _
        %s205 = sand.u32 %s21, 1
        %s206 = scalar_lea.sflag [#allocation6], %s205
        %s207 = sand.u32 %s64, 1
        %s208 = smul.addr %s207, 16
        %s209 = scalar_lea.vmem [#allocation5], %s208
        // Predicated region
        $region37: #{tpu_custom_call.1} parent=31 // pred_check
          %p210 = pneg %p77
        $region38: #{tpu_custom_call.1} parent=31 // pred_check_branch
          %212 = sbr.rel (%p210) target = $region40
        $region39: #{tpu_custom_call.1} parent=31 // pred_region
          %213 = dma.done %s206, 256
        $region40: #{tpu_custom_call.1} parent=31 // pred_fallthru
          _
        // Predicated region
        $region41: #{tpu_custom_call.1} parent=31 // pred_check
          %p214 = pneg %p98
        $region42: #{tpu_custom_call.1} parent=31 // pred_check_branch
          %216 = sbr.rel (%p214) target = $region44
        $region43: #{tpu_custom_call.1} parent=31 // pred_region
          %217 = dma.done [#allocation6], 256
        $region44: #{tpu_custom_call.1} parent=31 // pred_fallthru
          _
        %p218 = pneg %p49
        %p219 = pneg %p46
        %s220 = sand.u32 %s21, 1
        %s221 = scalar_lea.sflag [#allocation6], %s220
        %s222 = sand.u32 %s64, 1
        %s223 = smul.addr %s222, 16
        %s224 = scalar_lea.vmem [#allocation5], %s223
        %p225 = pneg %p77
        %p226 = pneg %p74
        %p227 = pneg %p98
        %p228 = pneg %p95
        %p229 = pneg %p126
        %p230 = pneg %p123
        %s231 = sand.u32 %s113, 1
        %s232 = scalar_lea.sflag [#allocation4], %s231
        %s233 = sand.u32 %s113, 1
        %s234 = smul.addr %s233, 16
        %s235 = scalar_lea.vmem [#allocation8], %s234
        %v236 = vld [vmem:[%s209] sm:$0xff]
        %v237 = vld [vmem:[%s209 + $0x8] sm:$0xff]
        %v238 = vld [vmem:[#allocation2] sm:$0xff]
        %v239 = vld [vmem:[#allocation2 + $0x8] sm:$0xff]
        %vm240 = vcmask 130048
        %v242 = vsel %vm240, %v238, 0
        %v245 = vsel %vm240, %v239, 0
        %247 = vmatprep.subr.mxu0 0.0
        %248 = vmatpush1.msra.mxu0 %v236
        %249 = vmatprep.subr.mxu0 0.0
        %250 = vmatpush1.msra.mxu0 %v237
        %251 = vmatprep.subr.mxu0 0.0
        %252 = vmatpush1.msra.mxu0 0.0
        %253 = vmatprep.subr.mxu0 0.0
        %254 = vmatpush1.msra.mxu0 0.0
        %255 = vmatprep.subr.mxu0 0.0
        %256 = vmatpush1.msra.mxu0 0.0
        %257 = vmatprep.subr.mxu0 0.0
        %258 = vmatpush1.msra.mxu0 0.0
        %259 = vmatprep.subr.mxu0 0.0
        %260 = vmatpush1.msra.mxu0 0.0
        %261 = vmatprep.subr.mxu0 0.0
        %262 = vmatpush1.msra.mxu0 0.0
        %263 = vmatprep.subr.mxu0 0.0
        %264 = vmatpush1.msra.mxu0 0.0
        %265 = vmatprep.subr.mxu0 0.0
        %266 = vmatpush1.msra.mxu0 0.0
        %267 = vmatprep.subr.mxu0 0.0
        %268 = vmatpush1.msra.mxu0 0.0
        %269 = vmatprep.subr.mxu0 0.0
        %270 = vmatpush1.msra.mxu0 0.0
        %271 = vmatprep.subr.mxu0 0.0
        %272 = vmatpush1.msra.mxu0 0.0
        %273 = vmatprep.subr.mxu0 0.0
        %274 = vmatpush1.msra.mxu0 0.0
        %275 = vmatprep.subr.mxu0 0.0
        %276 = vmatpush1.msra.mxu0 0.0
        %277 = vmatprep.subr.mxu0 0.0
        %278 = vmatpush1.msra.mxu0 0.0
        %279 = vmatprep.subr.mxu0 0.0
        %280 = vmatpush1.msra.mxu0 0.0
        %281 = vmatprep.subr.mxu0 0.0
        %282 = vmatpush1.msra.mxu0 0.0
        %283 = vmatprep.subr.mxu0 0.0
        %284 = vmatpush1.msra.mxu0 0.0
        %285 = vmatprep.subr.mxu0 0.0
        %286 = vmatpush1.msra.mxu0 0.0
        %287 = vmatprep.subr.mxu0 0.0
        %288 = vmatpush1.msra.mxu0 0.0
        %289 = vmatprep.subr.mxu0 0.0
        %290 = vmatpush1.msra.mxu0 0.0
        %291 = vmatprep.subr.mxu0 0.0
        %292 = vmatpush1.msra.mxu0 0.0
        %293 = vmatprep.subr.mxu0 0.0
        %294 = vmatpush1.msra.mxu0 0.0
        %295 = vmatprep.subr.mxu0 0.0
        %296 = vmatpush1.msra.mxu0 0.0
        %297 = vmatprep.subr.mxu0 0.0
        %298 = vmatpush1.msra.mxu0 0.0
        %299 = vmatprep.subr.mxu0 0.0
        %300 = vmatpush1.msra.mxu0 0.0
        %301 = vmatprep.subr.mxu0 0.0
        %302 = vmatpush1.msra.mxu0 0.0
        %303 = vmatprep.subr.mxu0 0.0
        %304 = vmatpush1.msra.mxu0 0.0
        %305 = vmatprep.subr.mxu0 0.0
        %306 = vmatpush1.msra.mxu0 0.0
        %307 = vmatprep.subr.mxu0 0.0
        %308 = vmatpush1.msra.mxu0 0.0
        %309 = vmatprep.subr.mxu0 0.0
        %310 = vmatpush1.msra.mxu0 0.0
        %311 = vmatprep.mubr.f32.mxu0 0.0
        %312 = vmatmul.mubr.f32.gmra.mrb[0].mxu0 %v242
        %v313 = vpop.f32.mrb[0].mxu0
        %v314 = vadd.f32 0.0, %v313
        %v315 = vpop.f32.mrb[0].mxu0
        %316 = vmatprep.mubr.f32.mxu0 0.0
        %317 = vmatmul.mubr.f32.gmra.mrb[0].mxu0 %v245
        %v318 = vpop.f32.mrb[0].mxu0
        %v319 = vadd.f32 0.0, %v318
        %v320 = vpop.f32.mrb[0].mxu0
        %321 = vdwg.mxu0
        %v322 = vld [vmem:[#allocation7] sm:$0xff]
        %v323 = vld [vmem:[#allocation7 + $0x8] sm:$0xff]
        %v325 = vsel %vm240, %v314, 0
        %v328 = vsel %vm240, %v319, 0
        %330 = vmatprep.subr.mxu0 0.0
        %331 = vmatpush1.msra.mxu0 %v322
        %332 = vmatprep.subr.mxu0 0.0
        %333 = vmatpush1.msra.mxu0 %v323
        %334 = vmatprep.subr.mxu0 0.0
        %335 = vmatpush1.msra.mxu0 0.0
        %336 = vmatprep.subr.mxu0 0.0
        %337 = vmatpush1.msra.mxu0 0.0
        %338 = vmatprep.subr.mxu0 0.0
        %339 = vmatpush1.msra.mxu0 0.0
        %340 = vmatprep.subr.mxu0 0.0
        %341 = vmatpush1.msra.mxu0 0.0
        %342 = vmatprep.subr.mxu0 0.0
        %343 = vmatpush1.msra.mxu0 0.0
        %344 = vmatprep.subr.mxu0 0.0
        %345 = vmatpush1.msra.mxu0 0.0
        %346 = vmatprep.subr.mxu0 0.0
        %347 = vmatpush1.msra.mxu0 0.0
        %348 = vmatprep.subr.mxu0 0.0
        %349 = vmatpush1.msra.mxu0 0.0
        %350 = vmatprep.subr.mxu0 0.0
        %351 = vmatpush1.msra.mxu0 0.0
        %352 = vmatprep.subr.mxu0 0.0
        %353 = vmatpush1.msra.mxu0 0.0
        %354 = vmatprep.subr.mxu0 0.0
        %355 = vmatpush1.msra.mxu0 0.0
        %356 = vmatprep.subr.mxu0 0.0
        %357 = vmatpush1.msra.mxu0 0.0
        %358 = vmatprep.subr.mxu0 0.0
        %359 = vmatpush1.msra.mxu0 0.0
        %360 = vmatprep.subr.mxu0 0.0
        %361 = vmatpush1.msra.mxu0 0.0
        %362 = vmatprep.subr.mxu0 0.0
        %363 = vmatpush1.msra.mxu0 0.0
        %364 = vmatprep.subr.mxu0 0.0
        %365 = vmatpush1.msra.mxu0 0.0
        %366 = vmatprep.subr.mxu0 0.0
        %367 = vmatpush1.msra.mxu0 0.0
        %368 = vmatprep.subr.mxu0 0.0
        %369 = vmatpush1.msra.mxu0 0.0
        %370 = vmatprep.subr.mxu0 0.0
        %371 = vmatpush1.msra.mxu0 0.0
        %372 = vmatprep.subr.mxu0 0.0
        %373 = vmatpush1.msra.mxu0 0.0
        %374 = vmatprep.subr.mxu0 0.0
        %375 = vmatpush1.msra.mxu0 0.0
        %376 = vmatprep.subr.mxu0 0.0
        %377 = vmatpush1.msra.mxu0 0.0
        %378 = vmatprep.subr.mxu0 0.0
        %379 = vmatpush1.msra.mxu0 0.0
        %380 = vmatprep.subr.mxu0 0.0
        %381 = vmatpush1.msra.mxu0 0.0
        %382 = vmatprep.subr.mxu0 0.0
        %383 = vmatpush1.msra.mxu0 0.0
        %384 = vmatprep.subr.mxu0 0.0
        %385 = vmatpush1.msra.mxu0 0.0
        %386 = vmatprep.subr.mxu0 0.0
        %387 = vmatpush1.msra.mxu0 0.0
        %388 = vmatprep.subr.mxu0 0.0
        %389 = vmatpush1.msra.mxu0 0.0
        %390 = vmatprep.subr.mxu0 0.0
        %391 = vmatpush1.msra.mxu0 0.0
        %392 = vmatprep.subr.mxu0 0.0
        %393 = vmatpush1.msra.mxu0 0.0
        %394 = vmatprep.mubr.f32.mxu0 0.0
        %395 = vmatmul.mubr.f32.gmra.mrb[0].mxu0 %v325
        %v396 = vpop.f32.mrb[0].mxu0
        %v397 = vadd.f32 0.0, %v396
        %v398 = vpop.f32.mrb[0].mxu0
        %399 = vmatprep.mubr.f32.mxu0 0.0
        %400 = vmatmul.mubr.f32.gmra.mrb[0].mxu0 %v328
        %v401 = vpop.f32.mrb[0].mxu0
        %v402 = vadd.f32 0.0, %v401
        %v403 = vpop.f32.mrb[0].mxu0
        %404 = vdwg.mxu0
        %405 = vst.msk [vmem:[%s235] sm:$0xff] %vm240, %v397
        %406 = vst.msk [vmem:[%s235 + $0x8] sm:$0xff] %vm240, %v402
        %s407 = sand.u32 %s113, 1
        %s408 = scalar_lea.sflag [#allocation4], %s407
        %s409 = sand.u32 %s113, 1
        %s410 = smul.addr %s409, 16
        %s411 = scalar_lea.vmem [#allocation8], %s410
        // Predicated region
        $region45: #{tpu_custom_call.1} parent=31 // pred_check
          %p412 = pneg %p123
        $region46: #{tpu_custom_call.1} parent=31 // pred_check_branch
          %414 = sbr.rel (%p412) target = $region48
        $region47: #{tpu_custom_call.1} parent=31 // pred_region
          %s416 = ssub.s32 256, 256
          %417 = vsyncadd %s408, %s416
          %s418 = smul.addr %s26, 2
          %s419 = smul.addr %s25, 6
          %s420 = sadd.s32 %s418, %s419
          %s421 = smul.addr %s420, 128
          %s422 = scalar_lea.hbm %s3, %s421
          %s423 = sshll.u32 %s411, 4
          %s424 = int_to_ptr.vmem [resolvable:$true] %s423
          %429 = dma.vmem_to_hbm [thread:$0]  %s424, 256, %s422, %s408, 128, 128, 8
        $region48: #{tpu_custom_call.1} parent=31 // pred_fallthru
          _
      $region32: #{tpu_custom_call.1} parent=5 // pred_fallthru
        _
      %p430 = scmp.le.s32.totalorder 2, %s16
      // Predicated region
      $region49: #{tpu_custom_call.1} parent=5 // pred_check
        %p431 = pneg %p430
      $region50: #{tpu_custom_call.1} parent=5 // pred_check_branch
        %433 = sbr.rel (%p431) target = $region52
      $region51: #{tpu_custom_call.1} parent=5 // pred_region
        %s434 = ssub.s32 %s16, 2
        // Predicated region
        $region53: #{tpu_custom_call.1} parent=51 // pred_check
          %p435 = pneg %p129
        $region54: #{tpu_custom_call.1} parent=51 // pred_check_branch
          %437 = sbr.rel (%p435) target = $region56
        $region55: #{tpu_custom_call.1} parent=51 // pred_region
          %s438 = sand.u32 %s114, 1
          %s439 = scalar_lea.sflag [#allocation4], %s438
          %s440 = sand.u32 %s114, 1
          %s441 = smul.addr %s440, 16
          %s442 = scalar_lea.vmem [#allocation8], %s441
          %443 = dma.done %s439, 256
        $region56: #{tpu_custom_call.1} parent=51 // pred_fallthru
          _
      $region52: #{tpu_custom_call.1} parent=5 // pred_fallthru
        _
    $region6: #{tpu_custom_call.1} parent=1 // loop_footer
      %s20 = sadd.s32 1, %s16
    $region7: #{tpu_custom_call.1} parent=1 // loop_footer_branch
      %15 = sbr.rel target = $region3
    $region8: #{tpu_custom_call.1} parent=1 // loop_exit
      _
    %444 = vsyncpa [#allocation3], 1
    %s445 = scalar_lea.sflag [#allocation3], 1
    %446 = vsyncpa %s445, 1
    %447 = vsyncpa [#allocation6], 1
    %s448 = scalar_lea.sflag [#allocation6], 1
    %449 = vsyncpa %s448, 1
    %450 = vsyncpa [#allocation4], 1
    %s451 = scalar_lea.sflag [#allocation4], 1
    %452 = vsyncpa %s451, 1

</llo_original>
